<compile_context>
chip_gen: v7x
topology: tpu7x:2x2x1
jax: 0.10.0
libtpu: 0.0.40
codegen_flags: <defaults>
</compile_context>

<pallas_src>
import jax
import jax.numpy as jnp
from jax.experimental import pallas as pl
from jax.experimental.pallas import tpu as pltpu

H = 32         # num_hidden (constructor param; 32 chosen for sublane alignment)
L = 2          # num_layers
FG_BIAS = 1.0  # forget gate bias (dead for zero initial cell state)


def _round_up(v, m):
    return -(-v // m) * m


def _pick_act_dtype():
    """bf16 activations only on generations with a bf16 VPU/EUP (v6e, v7x)."""
    try:
        dev = jax.devices()[0]
        if dev.platform != "tpu":
            return jnp.float32
        kind = dev.device_kind.lower()
    except Exception:
        return jnp.float32
    if ("v6" in kind) or ("v7" in kind) or ("7x" in kind):
        return jnp.bfloat16
    return jnp.float32           # v5e and older: bf16 casts would only add work


def make_kernel(act_dtype):
    def lstm_act(gates):
        # gates rows = [i | o | g]; zero-state cell: c_new = i*g, h = o*tanh(c)
        g = gates.astype(act_dtype)
        # sigmoid(z) = 0.5*tanh(0.5*z) + 0.5  -> 1 EUP op per element (vs exp+recip)
        io = jnp.tanh(g[0:2 * H, :] * 0.5) * 0.5 + 0.5        # (2H, TM): [i | o]
        g_g = jnp.tanh(g[2 * H:3 * H, :])                     # (H, TM)
        c_new = io[0:H, :] * g_g                              # f_gate * c_prev == 0
        return io[H:2 * H, :] * jnp.tanh(c_new)               # (H, TM) act_dtype

    def kernel(x_ref, g0_ref, wg_ref, bg_ref, wh_ref, bh_ref, out_ref):
        # Layout: coordinates on lanes, hidden features on sublanes.
        x = x_ref[...]                                        # (1, TM)  f32
        g0 = g0_ref[...]                                      # (3H, 2): [:,0]=w_eff [:,1]=b_eff
        # Layer 0: linear1 folded into the gate weights -> rank-1 VPU FMA,
        # no MXU matmul (a K=1 matmul would waste the MXU anyway).
        gates = g0[:, 0:1] * x + g0[:, 1:2]                   # (3H, TM) f32
        xt = lstm_act(gates)                                  # (H, TM) act_dtype

        for l in range(L - 1):                                # static, tiny
            # h_prev == c_prev == 0: W_hh dropped, b_hh folded into bg,
            # forget gate dead. bf16 operands, f32 accumulation.
            gates = (jnp.dot(wg_ref[l], xt.astype(jnp.bfloat16),
                             preferred_element_type=jnp.float32)
                     + bg_ref[l])                             # (3H, TM) f32
            xt = lstm_act(gates)

        # Fused heads: row 0 = linear_out (theta), row 1 = qt_linear_out (qt).
        out_ref[...] = (jnp.dot(wh_ref[...], xt.astype(jnp.bfloat16),
                                preferred_element_type=jnp.float32)
                        + bh_ref[...])                        # (2, TM) lane-dense f32
    return kernel


def _full_spec(shape):
    nz = len(shape)
    return pl.BlockSpec(shape, lambda i, nz=nz: (0,) * nz)


def meta_step_learner_forward(x, packed, act_dtype=None, tm_max=8192, min_steps=8):
    if act_dtype is None:
        act_dtype = _pick_act_dtype()
    n = x.shape[0]
    # Aim for ~min_steps grid steps (>= 4 per core on v7x's 2 TCs) while keeping
    # tiles large (step overhead ~0.35us) and lane-dense; cap at tm_max.
    tm = max(128, min(tm_max, _round_up(pl.cdiv(n, min_steps), 128)))
    n_pad = _round_up(n, tm)
    x_pad = jnp.pad(x.astype(jnp.float32), (0, n_pad - n)).reshape(1, n_pad)
    grid = (n_pad // tm,)

    in_specs = [
        pl.BlockSpec((1, tm), lambda i: (0, i)),   # x   (coords on lanes)
        _full_spec((3 * H, 2)),                    # layer-0 folded [w_eff | b_eff] (f32)
        _full_spec((L - 1, 3 * H, H)),             # gate weights layers 1.. (bf16)
        _full_spec((L - 1, 3 * H, 1)),             # gate biases b_ih + b_hh (f32)
        _full_spec((2, H)),                        # fused head weights (bf16)
        _full_spec((2, 1)),                        # fused head biases (f32)
    ]
    out_specs = pl.BlockSpec((2, tm), lambda i: (0, i))
    out_shape = jax.ShapeDtypeStruct((2, n_pad), jnp.float32)

    out = pl.pallas_call(
        make_kernel(act_dtype),
        out_shape=out_shape,
        grid_spec=pltpu.PrefetchScalarGridSpec(
            num_scalar_prefetch=0, grid=grid,
            in_specs=in_specs, out_specs=out_specs),
        compiler_params=pltpu.CompilerParams(
            dimension_semantics=("parallel",)),
    )(x_pad, packed["g0"], packed["wg"], packed["bg"],
      packed["whead"], packed["bhead"])
    # torch .squeeze() on (N,1) -> (N,); padded tail is sliced off here.
    return out[0, :n], out[1, :n]


def init_params(key):
    """Raw parameters in PyTorch layout (gate order i, f, g, o)."""
    ks = jax.random.split(key, 10)
    u = lambda k, shape, bound: jax.random.uniform(
        k, shape, jnp.float32, minval=-bound, maxval=bound)
    b1_lin = 1.0                       # 1/sqrt(in_features=1)
    b_lstm = 1.0 / (H ** 0.5)
    b_out = 1.0 / (H ** 0.5)
    return {
        "w1":   u(ks[0], (H, 1), b1_lin),        # linear1.weight
        "b1":   u(ks[1], (H,), b1_lin),          # linear1.bias
        "wih":  u(ks[2], (L, 4 * H, H), b_lstm), # weight_ih per layer
        "whh":  u(ks[3], (L, 4 * H, H), b_lstm), # weight_hh per layer
        "bih":  u(ks[4], (L, 4 * H), b_lstm),
        "bhh":  u(ks[5], (L, 4 * H), b_lstm),
        "wout": u(ks[6], (1, H), b_out),         # linear_out.weight
        "bout": u(ks[7], (1,), b_out),
        "wqt":  u(ks[8], (1, H), b_out),         # qt_linear_out.weight
        "bqt":  u(ks[9], (1,), b_out),
    }


def pack_params(p):
    """Pack raw PyTorch-layout params into the kernel's 6 flipped-layout inputs."""
    # PyTorch gate row order is [i, f, g, o]; keep only [i, o, g] (f is dead).
    idx = jnp.concatenate([jnp.arange(0, H),
                           jnp.arange(3 * H, 4 * H),
                           jnp.arange(2 * H, 3 * H)])
    wg = p["wih"][:, idx, :]                                  # (L, 3H, H)
    bg = (p["bih"] + p["bhh"])[:, idx]                        # (L, 3H)  (b_hh folded)
    # Fold linear1 (in_features == 1) into layer 0 (exact algebraic fold):
    #   gates0 = wg0 @ (w1*x + b1) + bg0 = (wg0@w1)*x + (wg0@b1 + bg0)
    w0_eff = wg[0] @ p["w1"]                                  # (3H, 1)
    b0_eff = wg[0] @ p["b1"] + bg[0]                          # (3H,)
    g0 = jnp.concatenate([w0_eff, b0_eff[:, None]], axis=1)   # (3H, 2) f32
    wg_rest = wg[1:].astype(jnp.bfloat16)                     # (L-1, 3H, H) bf16
    bg_rest = bg[1:, :, None].astype(jnp.float32)             # (L-1, 3H, 1) f32
    whead = jnp.concatenate([p["wout"], p["wqt"]],
                            axis=0).astype(jnp.bfloat16)      # (2, H) bf16
    bhead = jnp.stack([p["bout"], p["bqt"]], axis=0)          # (2, 1) f32
    return {"g0": g0, "wg": wg_rest, "bg": bg_rest,
            "whead": whead, "bhead": bhead}


def reference_forward(x, p):
    """Pure-JAX f32 reference: full, unsimplified forward in the original layout."""
    xt = x[:, None] @ p["w1"].T + p["b1"]                     # (N, H)
    for l in range(L):
        h = jnp.zeros((x.shape[0], H), jnp.float32)
        c = jnp.zeros((x.shape[0], H), jnp.float32)
        gates = (xt @ p["wih"][l].T + p["bih"][l]
                 + h @ p["whh"][l].T + p["bhh"][l])           # (N, 4H)
        i_g = jax.nn.sigmoid(gates[:, 0 * H:1 * H])
        f_g = jax.nn.sigmoid(gates[:, 1 * H:2 * H] + FG_BIAS)
        g_g = jnp.tanh(gates[:, 2 * H:3 * H])
        o_g = jax.nn.sigmoid(gates[:, 3 * H:4 * H])
        c = f_g * c + i_g * g_g
        xt = o_g * jnp.tanh(c)
    theta = xt @ p["wout"].T + p["bout"]
    qt = xt @ p["wqt"].T + p["bqt"]
    return theta.squeeze(-1), qt.squeeze(-1)


if __name__ == "__main__":
    key = jax.random.PRNGKey(0)
    k_param, k_x = jax.random.split(key)
    params = init_params(k_param)
    packed = pack_params(params)

    N = 4096   # flat optimizee parameters (coordinate-wise); -> ~8 parallel grid steps
    x = jax.random.normal(k_x, (N,), jnp.float32)

    act_dtype = _pick_act_dtype()
    theta, qt = meta_step_learner_forward(x, packed, act_dtype=act_dtype)
    theta, qt = jax.block_until_ready((theta, qt))

    theta_ref, qt_ref = reference_forward(x, params)
    assert theta.shape == (N,) and qt.shape == (N,)
    # bf16 MXU operands (all gens) and bf16 activations (v6e/v7x) loosen the
    # match against the pure-f32 reference; tolerances relaxed accordingly.
    if act_dtype == jnp.bfloat16:
        atol = rtol = 8e-2
    else:
        atol = rtol = 3e-2
    assert jnp.allclose(theta, theta_ref, atol=atol, rtol=rtol)
    assert jnp.allclose(qt, qt_ref, atol=atol, rtol=rtol)
    print("KERNEL_OK")
</pallas_src>

<mosaic_0001>
module attributes {stable_mosaic.version = 11 : i64} {
  func.func @kernel(%arg0: i32, %arg1: memref<1x512xf32, #tpu.memory_space<vmem>>, %arg2: memref<96x2xf32, #tpu.memory_space<vmem>>, %arg3: memref<1x96x32xbf16, #tpu.memory_space<vmem>>, %arg4: memref<1x96x1xf32, #tpu.memory_space<vmem>>, %arg5: memref<2x32xbf16, #tpu.memory_space<vmem>>, %arg6: memref<2x1xf32, #tpu.memory_space<vmem>>, %arg7: memref<2x512xf32, #tpu.memory_space<vmem>>) attributes {dimension_semantics = [#tpu.dimension_semantics<parallel>], iteration_bounds = array<i64: 8>, scalar_prefetch = 0 : i64, scratch_operands = 0 : i64, tpu.core_type = #tpu.core_type<tc>, window_params = [{transform_indices = @transform_0, window_bounds = array<i64: 1, 512>}, {pipeline_mode = #tpu.pipeline_mode<synchronous>, transform_indices = @transform_1, window_bounds = array<i64: 96, 2>}, {pipeline_mode = #tpu.pipeline_mode<synchronous>, transform_indices = @transform_2, window_bounds = array<i64: 1, 96, 32>}, {pipeline_mode = #tpu.pipeline_mode<synchronous>, transform_indices = @transform_3, window_bounds = array<i64: 1, 96, 1>}, {pipeline_mode = #tpu.pipeline_mode<synchronous>, transform_indices = @transform_4, window_bounds = array<i64: 2, 32>}, {pipeline_mode = #tpu.pipeline_mode<synchronous>, transform_indices = @transform_5, window_bounds = array<i64: 2, 1>}, {transform_indices = @transform_6, window_bounds = array<i64: 2, 512>}]} {
    %c0 = arith.constant 0 : index
    %c0_0 = arith.constant 0 : index
    %0 = vector.load %arg1[%c0, %c0_0] : memref<1x512xf32, #tpu.memory_space<vmem>>, vector<1x512xf32>
    %c0_1 = arith.constant 0 : index
    %c0_2 = arith.constant 0 : index
    %1 = vector.load %arg2[%c0_1, %c0_2] : memref<96x2xf32, #tpu.memory_space<vmem>>, vector<96x2xf32>
    %2 = vector.extract_strided_slice %1 {offsets = [0, 0], sizes = [96, 1], strides = [1, 1]} : vector<96x2xf32> to vector<96x1xf32>
    %3 = vector.broadcast %2 : vector<96x1xf32> to vector<96x512xf32>
    %4 = vector.broadcast %0 : vector<1x512xf32> to vector<96x512xf32>
    %5 = arith.mulf %3, %4 : vector<96x512xf32>
    %6 = vector.extract_strided_slice %1 {offsets = [0, 1], sizes = [96, 1], strides = [1, 1]} : vector<96x2xf32> to vector<96x1xf32>
    %7 = vector.broadcast %6 : vector<96x1xf32> to vector<96x512xf32>
    %8 = arith.addf %5, %7 : vector<96x512xf32>
    %9 = vector.extract_strided_slice %8 {offsets = [0, 0], sizes = [64, 512], strides = [1, 1]} : vector<96x512xf32> to vector<64x512xf32>
    %cst = arith.constant 5.000000e-01 : f32
    %10 = vector.broadcast %cst : f32 to vector<64x512xf32>
    %11 = arith.mulf %9, %10 : vector<64x512xf32>
    %12 = math.tanh %11 : vector<64x512xf32>
    %cst_3 = arith.constant 5.000000e-01 : f32
    %13 = vector.broadcast %cst_3 : f32 to vector<64x512xf32>
    %14 = arith.mulf %12, %13 : vector<64x512xf32>
    %cst_4 = arith.constant 5.000000e-01 : f32
    %15 = vector.broadcast %cst_4 : f32 to vector<64x512xf32>
    %16 = arith.addf %14, %15 : vector<64x512xf32>
    %17 = vector.extract_strided_slice %8 {offsets = [64, 0], sizes = [32, 512], strides = [1, 1]} : vector<96x512xf32> to vector<32x512xf32>
    %18 = math.tanh %17 : vector<32x512xf32>
    %19 = vector.extract_strided_slice %16 {offsets = [0, 0], sizes = [32, 512], strides = [1, 1]} : vector<64x512xf32> to vector<32x512xf32>
    %20 = arith.mulf %19, %18 : vector<32x512xf32>
    %21 = vector.extract_strided_slice %16 {offsets = [32, 0], sizes = [32, 512], strides = [1, 1]} : vector<64x512xf32> to vector<32x512xf32>
    %22 = math.tanh %20 : vector<32x512xf32>
    %23 = arith.mulf %21, %22 : vector<32x512xf32>
    %c0_5 = arith.constant 0 : index
    %c0_6 = arith.constant 0 : index
    %c0_7 = arith.constant 0 : index
    %24 = vector.load %arg3[%c0_5, %c0_6, %c0_7] : memref<1x96x32xbf16, #tpu.memory_space<vmem>>, vector<1x96x32xbf16>
    %25 = vector.shape_cast %24 : vector<1x96x32xbf16> to vector<96x32xbf16>
    %26 = arith.truncf %23 : vector<32x512xf32> to vector<32x512xbf16>
    %cst_8 = arith.constant dense<0.000000e+00> : vector<96x512xf32>
    %27 = tpu.matmul %25, %26, %cst_8 {dimension_numbers = #tpu.dot_dimension_numbers<[1], [0], [0], [1], [0, 0, 1, 1], [], []>} : vector<96x32xbf16>, vector<32x512xbf16>, vector<96x512xf32> -> vector<96x512xf32>
    %c0_9 = arith.constant 0 : index
    %c0_10 = arith.constant 0 : index
    %c0_11 = arith.constant 0 : index
    %28 = vector.load %arg4[%c0_9, %c0_10, %c0_11] : memref<1x96x1xf32, #tpu.memory_space<vmem>>, vector<1x96x1xf32>
    %29 = vector.shape_cast %28 : vector<1x96x1xf32> to vector<96x1xf32>
    %30 = vector.broadcast %29 : vector<96x1xf32> to vector<96x512xf32>
    %31 = arith.addf %27, %30 : vector<96x512xf32>
    %32 = vector.extract_strided_slice %31 {offsets = [0, 0], sizes = [64, 512], strides = [1, 1]} : vector<96x512xf32> to vector<64x512xf32>
    %cst_12 = arith.constant 5.000000e-01 : f32
    %33 = vector.broadcast %cst_12 : f32 to vector<64x512xf32>
    %34 = arith.mulf %32, %33 : vector<64x512xf32>
    %35 = math.tanh %34 : vector<64x512xf32>
    %cst_13 = arith.constant 5.000000e-01 : f32
    %36 = vector.broadcast %cst_13 : f32 to vector<64x512xf32>
    %37 = arith.mulf %35, %36 : vector<64x512xf32>
    %cst_14 = arith.constant 5.000000e-01 : f32
    %38 = vector.broadcast %cst_14 : f32 to vector<64x512xf32>
    %39 = arith.addf %37, %38 : vector<64x512xf32>
    %40 = vector.extract_strided_slice %31 {offsets = [64, 0], sizes = [32, 512], strides = [1, 1]} : vector<96x512xf32> to vector<32x512xf32>
    %41 = math.tanh %40 : vector<32x512xf32>
    %42 = vector.extract_strided_slice %39 {offsets = [0, 0], sizes = [32, 512], strides = [1, 1]} : vector<64x512xf32> to vector<32x512xf32>
    %43 = arith.mulf %42, %41 : vector<32x512xf32>
    %44 = vector.extract_strided_slice %39 {offsets = [32, 0], sizes = [32, 512], strides = [1, 1]} : vector<64x512xf32> to vector<32x512xf32>
    %45 = math.tanh %43 : vector<32x512xf32>
    %46 = arith.mulf %44, %45 : vector<32x512xf32>
    %c0_15 = arith.constant 0 : index
    %c0_16 = arith.constant 0 : index
    %47 = vector.load %arg5[%c0_15, %c0_16] : memref<2x32xbf16, #tpu.memory_space<vmem>>, vector<2x32xbf16>
    %48 = arith.truncf %46 : vector<32x512xf32> to vector<32x512xbf16>
    %cst_17 = arith.constant dense<0.000000e+00> : vector<2x512xf32>
    %49 = tpu.matmul %47, %48, %cst_17 {dimension_numbers = #tpu.dot_dimension_numbers<[1], [0], [0], [1], [0, 0, 1, 1], [], []>} : vector<2x32xbf16>, vector<32x512xbf16>, vector<2x512xf32> -> vector<2x512xf32>
    %c0_18 = arith.constant 0 : index
    %c0_19 = arith.constant 0 : index
    %50 = vector.load %arg6[%c0_18, %c0_19] : memref<2x1xf32, #tpu.memory_space<vmem>>, vector<2x1xf32>
    %51 = vector.broadcast %50 : vector<2x1xf32> to vector<2x512xf32>
    %52 = arith.addf %49, %51 : vector<2x512xf32>
    %c0_20 = arith.constant 0 : index
    %c0_21 = arith.constant 0 : index
    %53 = vector.load %arg7[%c0_20, %c0_21] : memref<2x512xf32, #tpu.memory_space<vmem>>, vector<2x512xf32>
    tpu.vector_store %arg7[%c0_20, %c0_21], %52 {strides = array<i32>} : memref<2x512xf32, #tpu.memory_space<vmem>>, vector<2x512xf32>,
    return
  }
  func.func @transform_0(%arg0: i32) -> (i32, i32) {
    %c0_i32 = arith.constant 0 : i32
    %c0_i32_0 = arith.constant 0 : i32
    return %c0_i32, %arg0 : i32, i32
  }
  func.func @transform_1(%arg0: i32) -> (i32, i32) {
    %c0_i32 = arith.constant 0 : i32
    %c0_i32_0 = arith.constant 0 : i32
    %c0_i32_1 = arith.constant 0 : i32
    return %c0_i32, %c0_i32_0 : i32, i32
  }
  func.func @transform_2(%arg0: i32) -> (i32, i32, i32) {
    %c0_i32 = arith.constant 0 : i32
    %c0_i32_0 = arith.constant 0 : i32
    %c0_i32_1 = arith.constant 0 : i32
    %c0_i32_2 = arith.constant 0 : i32
    return %c0_i32, %c0_i32_0, %c0_i32_1 : i32, i32, i32
  }
  func.func @transform_3(%arg0: i32) -> (i32, i32, i32) {
    %c0_i32 = arith.constant 0 : i32
    %c0_i32_0 = arith.constant 0 : i32
    %c0_i32_1 = arith.constant 0 : i32
    %c0_i32_2 = arith.constant 0 : i32
    return %c0_i32, %c0_i32_0, %c0_i32_1 : i32, i32, i32
  }
  func.func @transform_4(%arg0: i32) -> (i32, i32) {
    %c0_i32 = arith.constant 0 : i32
    %c0_i32_0 = arith.constant 0 : i32
    %c0_i32_1 = arith.constant 0 : i32
    return %c0_i32, %c0_i32_0 : i32, i32
  }
  func.func @transform_5(%arg0: i32) -> (i32, i32) {
    %c0_i32 = arith.constant 0 : i32
    %c0_i32_0 = arith.constant 0 : i32
    %c0_i32_1 = arith.constant 0 : i32
    return %c0_i32, %c0_i32_0 : i32, i32
  }
  func.func @transform_6(%arg0: i32) -> (i32, i32) {
    %c0_i32 = arith.constant 0 : i32
    %c0_i32_0 = arith.constant 0 : i32
    return %c0_i32, %arg0 : i32, i32
  }
}

</mosaic_0001>

<llo_original>
// kernel: tpu_custom_call.1
$region0: #{tpu_custom_call.1}
  #allocation0 [shape = 'u32[]', space=smem, size = 0x4, offset = 0x4, fixed_abs, tag = 'smem constant byte address 0x4 - core index']
  #allocation1 [shape = 'u32[144,128]{1,0:T(1,128)}', space=vmem, size = 0x12000, scoped, tag = 'internal scratch']
  %s0 = inlined_call_operand.vmem [shape: f32[1,4096], index: 0, kind: input, shape index: {}]
  %s1 = inlined_call_operand.vmem [shape: f32[96,2], index: 1, kind: input, shape index: {}]
  %s2 = inlined_call_operand.vmem [shape: bf16[1,96,32], index: 2, kind: input, shape index: {}]
  %s3 = inlined_call_operand.vmem [shape: f32[1,96,1], index: 3, kind: input, shape index: {}]
  %s4 = inlined_call_operand.vmem [shape: bf16[2,32], index: 4, kind: input, shape index: {}]
  %s5 = inlined_call_operand.vmem [shape: f32[2,1], index: 5, kind: input, shape index: {}]
  %s6 = inlined_call_operand.hbm [shape: f32[2,4096], index: 6, kind: output, shape index: {}]
  %s7 = sld [smem:[#allocation0]]
  $region57: #{tpu_custom_call.1} parent=0
    _
  %s9 = ssub.s32 1, %s7
  %s10 = scalar_select 0, %s9, %s7
  $region1: #{tpu_custom_call.1} parent=0
    #allocation2 [shape = 'u8[8192]{0}', space=vmem, size = 0x2000, scoped, tag = 'output window, operand 0']
    #allocation3 [shape = 's32[2]{0}', space=sflag, size = 0x8, scoped, tag = 'scoped memory for tpu_custom_call.1']
    %11 = vsyncpa [#allocation3], 0
    %s12 = scalar_lea.sflag [#allocation3], 1
    %13 = vsyncpa %s12, 0
    loop: start=0, step=1, limit=10
    $region2: #{tpu_custom_call.1} parent=1 // loop_pre_header
      _
    $region3: #{tpu_custom_call.1} parent=1 // loop_header
      %s15 = sphi 0, %s19
      %p16 = scmp.ge.s32.totalorder %s15, 10
      %s25 = sphi 0, %s27
      %s28 = sphi 0, %s25
      %s29 = sphi 0, %s28
      %s45 = sphi 0, %s29
      %s49 = sphi 0, %s49
      %s51 = sphi 0, %s49
      %s52 = sphi 0, %s51
      %s66 = sphi 0, %s52
      %s70 = sphi 0, %s70
      %s72 = sphi 0, %s70
      %s73 = sphi 0, %s72
      %s87 = sphi 0, %s73
      %s91 = sphi 0, %s91
      %s93 = sphi 0, %s91
      %s94 = sphi 0, %s93
      %s108 = sphi 0, %s94
      %s112 = sphi 0, %s112
      %s114 = sphi 0, %s112
      %s115 = sphi 0, %s114
      %s129 = sphi 0, %s115
      %s133 = sphi 0, %s133
      %s135 = sphi 0, %s133
      %s136 = sphi 0, %s135
      %s150 = sphi 0, %s136
      %s156 = sphi 0, %s158
      %s159 = sphi 0, %s156
      %s160 = sphi 0, %s159
      %s176 = sphi 0, %s160
    $region4: #{tpu_custom_call.1} parent=1 // loop_header_branch
      %18 = sbr.rel (%p16) target = $region8
    $region5: #{tpu_custom_call.1} parent=1 // loop_body
      %s20 = ssub.s32 %s15, 1
      %s21 = ssub.s32 %s15, 2
      %s22 = sadd.s32 %s15, 1
      %s23 = ssub.s32 %s15, %s22
      %p24 = scmp.eq.s32.totalorder %s23, 0
      %s26 = sadd.s32 %s25, 1
      %s27 = scalar_select %p24, %s25, %s26
      %p30 = pneg %p24
      %p31 = scmp.eq.s32.totalorder %s15, 7
      %p32 = por %p30, %p31
      %p33 = scmp.ne.s32.totalorder %s25, %s28
      %p34 = scmp.eq.s32.totalorder %s15, 0
      %p35 = por %p33, %p34
      %p36 = scmp.ne.s32.totalorder %s25, %s28
      %p37 = scmp.eq.s32.totalorder %s20, 7
      %p38 = por %p36, %p37
      %p39 = scmp.ne.s32.totalorder %s28, %s29
      %p40 = scmp.eq.s32.totalorder %s20, 0
      %p41 = por %p39, %p40
      %p42 = scmp.ne.s32.totalorder %s28, %s29
      %p43 = scmp.eq.s32.totalorder %s21, 7
      %p44 = por %p42, %p43
      %p46 = scmp.ne.s32.totalorder %s29, %s45
      %p47 = scmp.eq.s32.totalorder %s21, 0
      %p48 = por %p46, %p47
      %s50 = sadd.s32 %s49, 1
      %p53 = scmp.eq.s32.totalorder %s15, 7
      %p54 = scmp.ne.s32.totalorder %s49, %s51
      %p55 = scmp.eq.s32.totalorder %s15, 0
      %p56 = por %p54, %p55
      %p57 = scmp.ne.s32.totalorder %s49, %s51
      %p58 = scmp.eq.s32.totalorder %s20, 7
      %p59 = por %p57, %p58
      %p60 = scmp.ne.s32.totalorder %s51, %s52
      %p61 = scmp.eq.s32.totalorder %s20, 0
      %p62 = por %p60, %p61
      %p63 = scmp.ne.s32.totalorder %s51, %s52
      %p64 = scmp.eq.s32.totalorder %s21, 7
      %p65 = por %p63, %p64
      %p67 = scmp.ne.s32.totalorder %s52, %s66
      %p68 = scmp.eq.s32.totalorder %s21, 0
      %p69 = por %p67, %p68
      %s71 = sadd.s32 %s70, 1
      %p74 = scmp.eq.s32.totalorder %s15, 7
      %p75 = scmp.ne.s32.totalorder %s70, %s72
      %p76 = scmp.eq.s32.totalorder %s15, 0
      %p77 = por %p75, %p76
      %p78 = scmp.ne.s32.totalorder %s70, %s72
      %p79 = scmp.eq.s32.totalorder %s20, 7
      %p80 = por %p78, %p79
      %p81 = scmp.ne.s32.totalorder %s72, %s73
      %p82 = scmp.eq.s32.totalorder %s20, 0
      %p83 = por %p81, %p82
      %p84 = scmp.ne.s32.totalorder %s72, %s73
      %p85 = scmp.eq.s32.totalorder %s21, 7
      %p86 = por %p84, %p85
      %p88 = scmp.ne.s32.totalorder %s73, %s87
      %p89 = scmp.eq.s32.totalorder %s21, 0
      %p90 = por %p88, %p89
      %s92 = sadd.s32 %s91, 1
      %p95 = scmp.eq.s32.totalorder %s15, 7
      %p96 = scmp.ne.s32.totalorder %s91, %s93
      %p97 = scmp.eq.s32.totalorder %s15, 0
      %p98 = por %p96, %p97
      %p99 = scmp.ne.s32.totalorder %s91, %s93
      %p100 = scmp.eq.s32.totalorder %s20, 7
      %p101 = por %p99, %p100
      %p102 = scmp.ne.s32.totalorder %s93, %s94
      %p103 = scmp.eq.s32.totalorder %s20, 0
      %p104 = por %p102, %p103
      %p105 = scmp.ne.s32.totalorder %s93, %s94
      %p106 = scmp.eq.s32.totalorder %s21, 7
      %p107 = por %p105, %p106
      %p109 = scmp.ne.s32.totalorder %s94, %s108
      %p110 = scmp.eq.s32.totalorder %s21, 0
      %p111 = por %p109, %p110
      %s113 = sadd.s32 %s112, 1
      %p116 = scmp.eq.s32.totalorder %s15, 7
      %p117 = scmp.ne.s32.totalorder %s112, %s114
      %p118 = scmp.eq.s32.totalorder %s15, 0
      %p119 = por %p117, %p118
      %p120 = scmp.ne.s32.totalorder %s112, %s114
      %p121 = scmp.eq.s32.totalorder %s20, 7
      %p122 = por %p120, %p121
      %p123 = scmp.ne.s32.totalorder %s114, %s115
      %p124 = scmp.eq.s32.totalorder %s20, 0
      %p125 = por %p123, %p124
      %p126 = scmp.ne.s32.totalorder %s114, %s115
      %p127 = scmp.eq.s32.totalorder %s21, 7
      %p128 = por %p126, %p127
      %p130 = scmp.ne.s32.totalorder %s115, %s129
      %p131 = scmp.eq.s32.totalorder %s21, 0
      %p132 = por %p130, %p131
      %s134 = sadd.s32 %s133, 1
      %p137 = scmp.eq.s32.totalorder %s15, 7
      %p138 = scmp.ne.s32.totalorder %s133, %s135
      %p139 = scmp.eq.s32.totalorder %s15, 0
      %p140 = por %p138, %p139
      %p141 = scmp.ne.s32.totalorder %s133, %s135
      %p142 = scmp.eq.s32.totalorder %s20, 7
      %p143 = por %p141, %p142
      %p144 = scmp.ne.s32.totalorder %s135, %s136
      %p145 = scmp.eq.s32.totalorder %s20, 0
      %p146 = por %p144, %p145
      %p147 = scmp.ne.s32.totalorder %s135, %s136
      %p148 = scmp.eq.s32.totalorder %s21, 7
      %p149 = por %p147, %p148
      %p151 = scmp.ne.s32.totalorder %s136, %s150
      %p152 = scmp.eq.s32.totalorder %s21, 0
      %p153 = por %p151, %p152
      %s154 = ssub.s32 %s15, %s22
      %p155 = scmp.eq.s32.totalorder %s154, 0
      %s157 = sadd.s32 %s156, 1
      %s158 = scalar_select %p155, %s156, %s157
      %p161 = pneg %p155
      %p162 = scmp.eq.s32.totalorder %s15, 7
      %p163 = por %p161, %p162
      %p164 = scmp.ne.s32.totalorder %s156, %s159
      %p165 = scmp.eq.s32.totalorder %s15, 0
      %p166 = por %p164, %p165
      %p167 = scmp.ne.s32.totalorder %s156, %s159
      %p168 = scmp.eq.s32.totalorder %s20, 7
      %p169 = por %p167, %p168
      %p170 = scmp.ne.s32.totalorder %s159, %s160
      %p171 = scmp.eq.s32.totalorder %s20, 0
      %p172 = por %p170, %p171
      %p173 = scmp.ne.s32.totalorder %s159, %s160
      %p174 = scmp.eq.s32.totalorder %s21, 7
      %p175 = por %p173, %p174
      %p177 = scmp.ne.s32.totalorder %s160, %s176
      %p178 = scmp.eq.s32.totalorder %s21, 0
      %p179 = por %p177, %p178
      %p180 = scmp.le.s32.totalorder 1, %s15
      %p181 = scmp.lt.s32.totalorder %s15, 9
      %p182 = pnand %p180, %p181
      %p183 = pneg %p182
      // Predicated region
      $region9: #{tpu_custom_call.1} parent=5 // pred_check
        _
      $region10: #{tpu_custom_call.1} parent=5 // pred_check_branch
        %185 = sbr.rel (%p182) target = $region12
      $region11: #{tpu_custom_call.1} parent=5 // pred_region
        %s186 = ssub.s32 %s15, 1
        // Predicated region
        $region13: #{tpu_custom_call.1} parent=11 // pred_check
          %p187 = pneg %p62
        $region14: #{tpu_custom_call.1} parent=11 // pred_check_branch
          %189 = sbr.rel (%p187) target = $region16
        $region15: #{tpu_custom_call.1} parent=11 // pred_region
          _
        $region16: #{tpu_custom_call.1} parent=11 // pred_fallthru
          _
        // Predicated region
        $region17: #{tpu_custom_call.1} parent=11 // pred_check
          %p190 = pneg %p83
        $region18: #{tpu_custom_call.1} parent=11 // pred_check_branch
          %192 = sbr.rel (%p190) target = $region20
        $region19: #{tpu_custom_call.1} parent=11 // pred_region
          _
        $region20: #{tpu_custom_call.1} parent=11 // pred_fallthru
          _
        // Predicated region
        $region21: #{tpu_custom_call.1} parent=11 // pred_check
          %p193 = pneg %p104
        $region22: #{tpu_custom_call.1} parent=11 // pred_check_branch
          %195 = sbr.rel (%p193) target = $region24
        $region23: #{tpu_custom_call.1} parent=11 // pred_region
          _
        $region24: #{tpu_custom_call.1} parent=11 // pred_fallthru
          _
        // Predicated region
        $region25: #{tpu_custom_call.1} parent=11 // pred_check
          %p196 = pneg %p125
        $region26: #{tpu_custom_call.1} parent=11 // pred_check_branch
          %198 = sbr.rel (%p196) target = $region28
        $region27: #{tpu_custom_call.1} parent=11 // pred_region
          _
        $region28: #{tpu_custom_call.1} parent=11 // pred_fallthru
          _
        // Predicated region
        $region29: #{tpu_custom_call.1} parent=11 // pred_check
          %p199 = pneg %p146
        $region30: #{tpu_custom_call.1} parent=11 // pred_check_branch
          %201 = sbr.rel (%p199) target = $region32
        $region31: #{tpu_custom_call.1} parent=11 // pred_region
          _
        $region32: #{tpu_custom_call.1} parent=11 // pred_fallthru
          _
      $region12: #{tpu_custom_call.1} parent=5 // pred_fallthru
        _
      %p202 = scmp.lt.s32.totalorder %s15, 8
      // Predicated region
      $region33: #{tpu_custom_call.1} parent=5 // pred_check
        %p203 = pneg %p202
      $region34: #{tpu_custom_call.1} parent=5 // pred_check_branch
        %205 = sbr.rel (%p203) target = $region36
      $region35: #{tpu_custom_call.1} parent=5 // pred_region
        // Predicated region
        $region37: #{tpu_custom_call.1} parent=35 // pred_check
          %p206 = pneg %p35
        $region38: #{tpu_custom_call.1} parent=35 // pred_check_branch
          %208 = sbr.rel (%p206) target = $region40
        $region39: #{tpu_custom_call.1} parent=35 // pred_region
          %s209 = smul.u32 4, %s15
          %p210 = scmp.lt.s32.totalorder %s209, 31
          %s211 = scalar_select %p210, %s209, 31
          %s212 = scalar_lea.vmem %s0, %s211
          %s213 = smul.u32 4, %s15
        $region40: #{tpu_custom_call.1} parent=35 // pred_fallthru
          _
      $region36: #{tpu_custom_call.1} parent=5 // pred_fallthru
        _
      %p214 = scmp.le.s32.totalorder 1, %s15
      %p215 = scmp.lt.s32.totalorder %s15, 9
      %p216 = pnand %p214, %p215
      %p217 = pneg %p216
      // Predicated region
      $region41: #{tpu_custom_call.1} parent=5 // pred_check
        _
      $region42: #{tpu_custom_call.1} parent=5 // pred_check_branch
        %219 = sbr.rel (%p216) target = $region44
      $region43: #{tpu_custom_call.1} parent=5 // pred_region
        %s220 = ssub.s32 %s15, 1
        %s221 = smul.u32 4, %s20
        %p222 = scmp.lt.s32.totalorder %s221, 31
        %s223 = scalar_select %p222, %s221, 31
        %s224 = scalar_lea.vmem %s0, %s223
        %p225 = pneg %p41
        %p226 = pneg %p38
        %p227 = pneg %p62
        %p228 = pneg %p59
        %p229 = pneg %p83
        %p230 = pneg %p80
        %p231 = pneg %p104
        %p232 = pneg %p101
        %p233 = pneg %p125
        %p234 = pneg %p122
        %p235 = pneg %p146
        %p236 = pneg %p143
        %p237 = pneg %p172
        %p238 = pneg %p169
        %s239 = sand.u32 %s159, 1
        %s240 = scalar_lea.sflag [#allocation3], %s239
        %s241 = sand.u32 %s159, 1
        %s242 = smul.addr %s241, 8
        %s243 = scalar_lea.vmem [#allocation2], %s242
        %s244 = smul.u32 4, %s20
        %p245 = scmp.lt.s32.totalorder %s244, 31
        %s246 = scalar_select %p245, %s244, 31
        %s247 = scalar_lea.vmem %s0, %s246
        %s248 = smul.u32 4, %s20
        %s249 = smul.u32 4, %s20
        %v251 = vld [vmem:[%s247] sm:$0xf]
        %v252 = vld [vmem:[%s1] sm:$0xff]
        %v253 = vld [vmem:[%s1 + $0x8] sm:$0xff]
        %v254 = vld [vmem:[%s1 + $0x10] sm:$0xff]
        %v255 = vld [vmem:[%s1 + $0x18] sm:$0xff]
        %v256 = vld [vmem:[%s1 + $0x20] sm:$0xff]
        %v257 = vld [vmem:[%s1 + $0x28] sm:$0xff]
        %v258 = vld [vmem:[%s1 + $0x30] sm:$0xff]
        %v259 = vld [vmem:[%s1 + $0x38] sm:$0xff]
        %v260 = vld [vmem:[%s1 + $0x40] sm:$0xff]
        %v261 = vld [vmem:[%s1 + $0x48] sm:$0xff]
        %v262 = vld [vmem:[%s1 + $0x50] sm:$0xff]
        %v263 = vld [vmem:[%s1 + $0x58] sm:$0xff]
        %265 = vset.pattern.permute.xlu0 0
        %266 = vperm.xlu0 %265, %v252
        %v267 = vpop.permute.xlu0 %266
        %270 = vset.pattern.permute.xlu0 0
        %271 = vperm.xlu0 %270, %v253
        %v272 = vpop.permute.xlu0 %271
        %275 = vset.pattern.permute.xlu0 0
        %276 = vperm.xlu0 %275, %v254
        %v277 = vpop.permute.xlu0 %276
        %280 = vset.pattern.permute.xlu0 0
        %281 = vperm.xlu0 %280, %v255
        %v282 = vpop.permute.xlu0 %281
        %285 = vset.pattern.permute.xlu0 0
        %286 = vperm.xlu0 %285, %v256
        %v287 = vpop.permute.xlu0 %286
        %290 = vset.pattern.permute.xlu0 0
        %291 = vperm.xlu0 %290, %v257
        %v292 = vpop.permute.xlu0 %291
        %295 = vset.pattern.permute.xlu0 0
        %296 = vperm.xlu0 %295, %v258
        %v297 = vpop.permute.xlu0 %296
        %300 = vset.pattern.permute.xlu0 0
        %301 = vperm.xlu0 %300, %v259
        %v302 = vpop.permute.xlu0 %301
        %305 = vset.pattern.permute.xlu0 0
        %306 = vperm.xlu0 %305, %v260
        %v307 = vpop.permute.xlu0 %306
        %310 = vset.pattern.permute.xlu0 0
        %311 = vperm.xlu0 %310, %v261
        %v312 = vpop.permute.xlu0 %311
        %315 = vset.pattern.permute.xlu0 0
        %316 = vperm.xlu0 %315, %v262
        %v317 = vpop.permute.xlu0 %316
        %320 = vset.pattern.permute.xlu0 0
        %321 = vperm.xlu0 %320, %v263
        %v322 = vpop.permute.xlu0 %321
        %v325 = vlaneseq
        %v326 = vshrl.u32 %v325, 7
        %v327 = vsub.s32 0, %v326
        %v328 = vrot.slane %v251, %v327
        %v329 = vlaneseq
        %v330 = vshrl.u32 %v329, 7
        %v331 = vsub.s32 1, %v330
        %v332 = vrot.slane %v251, %v331
        %v333 = vlaneseq
        %v334 = vshrl.u32 %v333, 7
        %v335 = vsub.s32 2, %v334
        %v336 = vrot.slane %v251, %v335
        %v337 = vlaneseq
        %v338 = vshrl.u32 %v337, 7
        %v339 = vsub.s32 3, %v338
        %v340 = vrot.slane %v251, %v339
        %v345 = vmul.f32 %v267, %v328
        %v346 = vmul.f32 %v267, %v332
        %v347 = vmul.f32 %v267, %v336
        %v348 = vmul.f32 %v267, %v340
        %v349 = vmul.f32 %v272, %v328
        %v350 = vmul.f32 %v272, %v332
        %v351 = vmul.f32 %v272, %v336
        %v352 = vmul.f32 %v272, %v340
        %v353 = vmul.f32 %v277, %v328
        %v354 = vmul.f32 %v277, %v332
        %v355 = vmul.f32 %v277, %v336
        %v356 = vmul.f32 %v277, %v340
        %v357 = vmul.f32 %v282, %v328
        %v358 = vmul.f32 %v282, %v332
        %v359 = vmul.f32 %v282, %v336
        %v360 = vmul.f32 %v282, %v340
        %v361 = vmul.f32 %v287, %v328
        %v362 = vmul.f32 %v287, %v332
        %v363 = vmul.f32 %v287, %v336
        %v364 = vmul.f32 %v287, %v340
        %v365 = vmul.f32 %v292, %v328
        %v366 = vmul.f32 %v292, %v332
        %v367 = vmul.f32 %v292, %v336
        %v368 = vmul.f32 %v292, %v340
        %v369 = vmul.f32 %v297, %v328
        %v370 = vmul.f32 %v297, %v332
        %v371 = vmul.f32 %v297, %v336
        %v372 = vmul.f32 %v297, %v340
        %v373 = vmul.f32 %v302, %v328
        %v374 = vmul.f32 %v302, %v332
        %v375 = vmul.f32 %v302, %v336
        %v376 = vmul.f32 %v302, %v340
        %v377 = vmul.f32 %v307, %v328
        %v378 = vmul.f32 %v307, %v332
        %v379 = vmul.f32 %v307, %v336
        %v380 = vmul.f32 %v307, %v340
        %v381 = vmul.f32 %v312, %v328
        %v382 = vmul.f32 %v312, %v332
        %v383 = vmul.f32 %v312, %v336
        %v384 = vmul.f32 %v312, %v340
        %v385 = vmul.f32 %v317, %v328
        %v386 = vmul.f32 %v317, %v332
        %v387 = vmul.f32 %v317, %v336
        %v388 = vmul.f32 %v317, %v340
        %v389 = vmul.f32 %v322, %v328
        %v390 = vmul.f32 %v322, %v332
        %v391 = vmul.f32 %v322, %v336
        %v392 = vmul.f32 %v322, %v340
        %393 = vset.pattern.permute.xlu0 1
        %394 = vperm.xlu0 %393, %v252
        %v395 = vpop.permute.xlu0 %394
        %397 = vset.pattern.permute.xlu0 1
        %398 = vperm.xlu0 %397, %v253
        %v399 = vpop.permute.xlu0 %398
        %401 = vset.pattern.permute.xlu0 1
        %402 = vperm.xlu0 %401, %v254
        %v403 = vpop.permute.xlu0 %402
        %405 = vset.pattern.permute.xlu0 1
        %406 = vperm.xlu0 %405, %v255
        %v407 = vpop.permute.xlu0 %406
        %409 = vset.pattern.permute.xlu0 1
        %410 = vperm.xlu0 %409, %v256
        %v411 = vpop.permute.xlu0 %410
        %413 = vset.pattern.permute.xlu0 1
        %414 = vperm.xlu0 %413, %v257
        %v415 = vpop.permute.xlu0 %414
        %417 = vset.pattern.permute.xlu0 1
        %418 = vperm.xlu0 %417, %v258
        %v419 = vpop.permute.xlu0 %418
        %421 = vset.pattern.permute.xlu0 1
        %422 = vperm.xlu0 %421, %v259
        %v423 = vpop.permute.xlu0 %422
        %425 = vset.pattern.permute.xlu0 1
        %426 = vperm.xlu0 %425, %v260
        %v427 = vpop.permute.xlu0 %426
        %429 = vset.pattern.permute.xlu0 1
        %430 = vperm.xlu0 %429, %v261
        %v431 = vpop.permute.xlu0 %430
        %433 = vset.pattern.permute.xlu0 1
        %434 = vperm.xlu0 %433, %v262
        %v435 = vpop.permute.xlu0 %434
        %437 = vset.pattern.permute.xlu0 1
        %438 = vperm.xlu0 %437, %v263
        %v439 = vpop.permute.xlu0 %438
        %v441 = vadd.f32 %v345, %v395
        %v442 = vadd.f32 %v346, %v395
        %v443 = vadd.f32 %v347, %v395
        %v444 = vadd.f32 %v348, %v395
        %v445 = vadd.f32 %v349, %v399
        %v446 = vadd.f32 %v350, %v399
        %v447 = vadd.f32 %v351, %v399
        %v448 = vadd.f32 %v352, %v399
        %v449 = vadd.f32 %v353, %v403
        %v450 = vadd.f32 %v354, %v403
        %v451 = vadd.f32 %v355, %v403
        %v452 = vadd.f32 %v356, %v403
        %v453 = vadd.f32 %v357, %v407
        %v454 = vadd.f32 %v358, %v407
        %v455 = vadd.f32 %v359, %v407
        %v456 = vadd.f32 %v360, %v407
        %v457 = vadd.f32 %v361, %v411
        %v458 = vadd.f32 %v362, %v411
        %v459 = vadd.f32 %v363, %v411
        %v460 = vadd.f32 %v364, %v411
        %v461 = vadd.f32 %v365, %v415
        %v462 = vadd.f32 %v366, %v415
        %v463 = vadd.f32 %v367, %v415
        %v464 = vadd.f32 %v368, %v415
        %v465 = vadd.f32 %v369, %v419
        %v466 = vadd.f32 %v370, %v419
        %v467 = vadd.f32 %v371, %v419
        %v468 = vadd.f32 %v372, %v419
        %v469 = vadd.f32 %v373, %v423
        %v470 = vadd.f32 %v374, %v423
        %v471 = vadd.f32 %v375, %v423
        %v472 = vadd.f32 %v376, %v423
        %v473 = vadd.f32 %v377, %v427
        %v474 = vadd.f32 %v378, %v427
        %v475 = vadd.f32 %v379, %v427
        %v476 = vadd.f32 %v380, %v427
        %v477 = vadd.f32 %v381, %v431
        %v478 = vadd.f32 %v382, %v431
        %v479 = vadd.f32 %v383, %v431
        %v480 = vadd.f32 %v384, %v431
        %v481 = vadd.f32 %v385, %v435
        %v482 = vadd.f32 %v386, %v435
        %v483 = vadd.f32 %v387, %v435
        %v484 = vadd.f32 %v388, %v435
        %v485 = vadd.f32 %v389, %v439
        %v486 = vadd.f32 %v390, %v439
        %v487 = vadd.f32 %v391, %v439
        %v488 = vadd.f32 %v392, %v439
        %v489 = vmul.f32 %v441, 0.5
        %v490 = vmul.f32 %v442, 0.5
        %v491 = vmul.f32 %v443, 0.5
        %v492 = vmul.f32 %v444, 0.5
        %v493 = vmul.f32 %v445, 0.5
        %v494 = vmul.f32 %v446, 0.5
        %v495 = vmul.f32 %v447, 0.5
        %v496 = vmul.f32 %v448, 0.5
        %v497 = vmul.f32 %v449, 0.5
        %v498 = vmul.f32 %v450, 0.5
        %v499 = vmul.f32 %v451, 0.5
        %v500 = vmul.f32 %v452, 0.5
        %v501 = vmul.f32 %v453, 0.5
        %v502 = vmul.f32 %v454, 0.5
        %v503 = vmul.f32 %v455, 0.5
        %v504 = vmul.f32 %v456, 0.5
        %v505 = vmul.f32 %v457, 0.5
        %v506 = vmul.f32 %v458, 0.5
        %v507 = vmul.f32 %v459, 0.5
        %v508 = vmul.f32 %v460, 0.5
        %v509 = vmul.f32 %v461, 0.5
        %v510 = vmul.f32 %v462, 0.5
        %v511 = vmul.f32 %v463, 0.5
        %v512 = vmul.f32 %v464, 0.5
        %v513 = vmul.f32 %v465, 0.5
        %v514 = vmul.f32 %v466, 0.5
        %v515 = vmul.f32 %v467, 0.5
        %v516 = vmul.f32 %v468, 0.5
        %v517 = vmul.f32 %v469, 0.5
        %v518 = vmul.f32 %v470, 0.5
        %v519 = vmul.f32 %v471, 0.5
        %v520 = vmul.f32 %v472, 0.5
        %v521 = vtanh.pop %v489
        %v522 = vtanh.pop %v490
        %v523 = vtanh.pop %v491
        %v524 = vtanh.pop %v492
        %v525 = vtanh.pop %v493
        %v526 = vtanh.pop %v494
        %v527 = vtanh.pop %v495
        %v528 = vtanh.pop %v496
        %v529 = vtanh.pop %v497
        %v530 = vtanh.pop %v498
        %v531 = vtanh.pop %v499
        %v532 = vtanh.pop %v500
        %v533 = vtanh.pop %v501
        %v534 = vtanh.pop %v502
        %v535 = vtanh.pop %v503
        %v536 = vtanh.pop %v504
        %v537 = vtanh.pop %v505
        %v538 = vtanh.pop %v506
        %v539 = vtanh.pop %v507
        %v540 = vtanh.pop %v508
        %v541 = vtanh.pop %v509
        %v542 = vtanh.pop %v510
        %v543 = vtanh.pop %v511
        %v544 = vtanh.pop %v512
        %v545 = vtanh.pop %v513
        %v546 = vtanh.pop %v514
        %v547 = vtanh.pop %v515
        %v548 = vtanh.pop %v516
        %v549 = vtanh.pop %v517
        %v550 = vtanh.pop %v518
        %v551 = vtanh.pop %v519
        %v552 = vtanh.pop %v520
        %v553 = vmul.f32 %v521, 0.5
        %v554 = vmul.f32 %v522, 0.5
        %v555 = vmul.f32 %v523, 0.5
        %v556 = vmul.f32 %v524, 0.5
        %v557 = vmul.f32 %v525, 0.5
        %v558 = vmul.f32 %v526, 0.5
        %v559 = vmul.f32 %v527, 0.5
        %v560 = vmul.f32 %v528, 0.5
        %v561 = vmul.f32 %v529, 0.5
        %v562 = vmul.f32 %v530, 0.5
        %v563 = vmul.f32 %v531, 0.5
        %v564 = vmul.f32 %v532, 0.5
        %v565 = vmul.f32 %v533, 0.5
        %v566 = vmul.f32 %v534, 0.5
        %v567 = vmul.f32 %v535, 0.5
        %v568 = vmul.f32 %v536, 0.5
        %v569 = vmul.f32 %v537, 0.5
        %v570 = vmul.f32 %v538, 0.5
        %v571 = vmul.f32 %v539, 0.5
        %v572 = vmul.f32 %v540, 0.5
        %v573 = vmul.f32 %v541, 0.5
        %v574 = vmul.f32 %v542, 0.5
        %v575 = vmul.f32 %v543, 0.5
        %v576 = vmul.f32 %v544, 0.5
        %v577 = vmul.f32 %v545, 0.5
        %v578 = vmul.f32 %v546, 0.5
        %v579 = vmul.f32 %v547, 0.5
        %v580 = vmul.f32 %v548, 0.5
        %v581 = vmul.f32 %v549, 0.5
        %v582 = vmul.f32 %v550, 0.5
        %v583 = vmul.f32 %v551, 0.5
        %v584 = vmul.f32 %v552, 0.5
        %v585 = vadd.f32 %v553, 0.5
        %v586 = vadd.f32 %v554, 0.5
        %v587 = vadd.f32 %v555, 0.5
        %v588 = vadd.f32 %v556, 0.5
        %v589 = vadd.f32 %v557, 0.5
        %v590 = vadd.f32 %v558, 0.5
        %v591 = vadd.f32 %v559, 0.5
        %v592 = vadd.f32 %v560, 0.5
        %v593 = vadd.f32 %v561, 0.5
        %v594 = vadd.f32 %v562, 0.5
        %v595 = vadd.f32 %v563, 0.5
        %v596 = vadd.f32 %v564, 0.5
        %v597 = vadd.f32 %v565, 0.5
        %v598 = vadd.f32 %v566, 0.5
        %v599 = vadd.f32 %v567, 0.5
        %v600 = vadd.f32 %v568, 0.5
        %v601 = vadd.f32 %v569, 0.5
        %v602 = vadd.f32 %v570, 0.5
        %v603 = vadd.f32 %v571, 0.5
        %v604 = vadd.f32 %v572, 0.5
        %v605 = vadd.f32 %v573, 0.5
        %v606 = vadd.f32 %v574, 0.5
        %v607 = vadd.f32 %v575, 0.5
        %v608 = vadd.f32 %v576, 0.5
        %v609 = vadd.f32 %v577, 0.5
        %v610 = vadd.f32 %v578, 0.5
        %v611 = vadd.f32 %v579, 0.5
        %v612 = vadd.f32 %v580, 0.5
        %v613 = vadd.f32 %v581, 0.5
        %v614 = vadd.f32 %v582, 0.5
        %v615 = vadd.f32 %v583, 0.5
        %v616 = vadd.f32 %v584, 0.5
        %v617 = vtanh.pop %v473
        %v618 = vtanh.pop %v474
        %v619 = vtanh.pop %v475
        %v620 = vtanh.pop %v476
        %v621 = vtanh.pop %v477
        %v622 = vtanh.pop %v478
        %v623 = vtanh.pop %v479
        %v624 = vtanh.pop %v480
        %v625 = vtanh.pop %v481
        %v626 = vtanh.pop %v482
        %v627 = vtanh.pop %v483
        %v628 = vtanh.pop %v484
        %v629 = vtanh.pop %v485
        %v630 = vtanh.pop %v486
        %v631 = vtanh.pop %v487
        %v632 = vtanh.pop %v488
        %v633 = vmul.f32 %v585, %v617
        %v634 = vmul.f32 %v586, %v618
        %v635 = vmul.f32 %v587, %v619
        %v636 = vmul.f32 %v588, %v620
        %v637 = vmul.f32 %v589, %v621
        %v638 = vmul.f32 %v590, %v622
        %v639 = vmul.f32 %v591, %v623
        %v640 = vmul.f32 %v592, %v624
        %v641 = vmul.f32 %v593, %v625
        %v642 = vmul.f32 %v594, %v626
        %v643 = vmul.f32 %v595, %v627
        %v644 = vmul.f32 %v596, %v628
        %v645 = vmul.f32 %v597, %v629
        %v646 = vmul.f32 %v598, %v630
        %v647 = vmul.f32 %v599, %v631
        %v648 = vmul.f32 %v600, %v632
        %v649 = vtanh.pop %v633
        %v650 = vtanh.pop %v634
        %v651 = vtanh.pop %v635
        %v652 = vtanh.pop %v636
        %v653 = vtanh.pop %v637
        %v654 = vtanh.pop %v638
        %v655 = vtanh.pop %v639
        %v656 = vtanh.pop %v640
        %v657 = vtanh.pop %v641
        %v658 = vtanh.pop %v642
        %v659 = vtanh.pop %v643
        %v660 = vtanh.pop %v644
        %v661 = vtanh.pop %v645
        %v662 = vtanh.pop %v646
        %v663 = vtanh.pop %v647
        %v664 = vtanh.pop %v648
        %v665 = vmul.f32 %v601, %v649
        %v666 = vmul.f32 %v602, %v650
        %v667 = vmul.f32 %v603, %v651
        %v668 = vmul.f32 %v604, %v652
        %v669 = vmul.f32 %v605, %v653
        %v670 = vmul.f32 %v606, %v654
        %v671 = vmul.f32 %v607, %v655
        %v672 = vmul.f32 %v608, %v656
        %v673 = vmul.f32 %v609, %v657
        %v674 = vmul.f32 %v610, %v658
        %v675 = vmul.f32 %v611, %v659
        %v676 = vmul.f32 %v612, %v660
        %v677 = vmul.f32 %v613, %v661
        %v678 = vmul.f32 %v614, %v662
        %v679 = vmul.f32 %v615, %v663
        %v680 = vmul.f32 %v616, %v664
        %v681 = vld [vmem:[%s2] sm:$0xf]
        %v682 = vld [vmem:[%s2 + $0x4] sm:$0xf]
        %v683 = vld [vmem:[%s2 + $0x8] sm:$0xf]
        %v684 = vld [vmem:[%s2 + $0xc] sm:$0xf]
        %v685 = vld [vmem:[%s2 + $0x10] sm:$0xf]
        %v686 = vld [vmem:[%s2 + $0x14] sm:$0xf]
        %v687 = vld [vmem:[%s2 + $0x18] sm:$0xf]
        %v688 = vld [vmem:[%s2 + $0x1c] sm:$0xf]
        %v689 = vld [vmem:[%s2 + $0x20] sm:$0xf]
        %v690 = vld [vmem:[%s2 + $0x24] sm:$0xf]
        %v691 = vld [vmem:[%s2 + $0x28] sm:$0xf]
        %v692 = vld [vmem:[%s2 + $0x2c] sm:$0xf]
        %v693 = vpack.c.bf16 %v669, %v665
        %v694 = vpack.c.bf16 %v670, %v666
        %v695 = vpack.c.bf16 %v671, %v667
        %v696 = vpack.c.bf16 %v672, %v668
        %v697 = vpack.c.bf16 %v677, %v673
        %v698 = vpack.c.bf16 %v678, %v674
        %v699 = vpack.c.bf16 %v679, %v675
        %v700 = vpack.c.bf16 %v680, %v676
        %v701 = vld [vmem:[%s3] sm:$0xff]
        %v702 = vld [vmem:[%s3 + $0x8] sm:$0xff]
        %v703 = vld [vmem:[%s3 + $0x10] sm:$0xff]
        %v704 = vld [vmem:[%s3 + $0x18] sm:$0xff]
        %v705 = vld [vmem:[%s3 + $0x20] sm:$0xff]
        %v706 = vld [vmem:[%s3 + $0x28] sm:$0xff]
        %v707 = vld [vmem:[%s3 + $0x30] sm:$0xff]
        %v708 = vld [vmem:[%s3 + $0x38] sm:$0xff]
        %v709 = vld [vmem:[%s3 + $0x40] sm:$0xff]
        %v710 = vld [vmem:[%s3 + $0x48] sm:$0xff]
        %v711 = vld [vmem:[%s3 + $0x50] sm:$0xff]
        %v712 = vld [vmem:[%s3 + $0x58] sm:$0xff]
        %714 = vset.pattern.permute.xlu0 0
        %715 = vperm.xlu0 %714, %v701
        %v716 = vpop.permute.xlu0 %715
        %719 = vset.pattern.permute.xlu0 0
        %720 = vperm.xlu0 %719, %v702
        %v721 = vpop.permute.xlu0 %720
        %724 = vset.pattern.permute.xlu0 0
        %725 = vperm.xlu0 %724, %v703
        %v726 = vpop.permute.xlu0 %725
        %729 = vset.pattern.permute.xlu0 0
        %730 = vperm.xlu0 %729, %v704
        %v731 = vpop.permute.xlu0 %730
        %734 = vset.pattern.permute.xlu0 0
        %735 = vperm.xlu0 %734, %v705
        %v736 = vpop.permute.xlu0 %735
        %739 = vset.pattern.permute.xlu0 0
        %740 = vperm.xlu0 %739, %v706
        %v741 = vpop.permute.xlu0 %740
        %744 = vset.pattern.permute.xlu0 0
        %745 = vperm.xlu0 %744, %v707
        %v746 = vpop.permute.xlu0 %745
        %749 = vset.pattern.permute.xlu0 0
        %750 = vperm.xlu0 %749, %v708
        %v751 = vpop.permute.xlu0 %750
        %754 = vset.pattern.permute.xlu0 0
        %755 = vperm.xlu0 %754, %v709
        %v756 = vpop.permute.xlu0 %755
        %759 = vset.pattern.permute.xlu0 0
        %760 = vperm.xlu0 %759, %v710
        %v761 = vpop.permute.xlu0 %760
        %764 = vset.pattern.permute.xlu0 0
        %765 = vperm.xlu0 %764, %v711
        %v766 = vpop.permute.xlu0 %765
        %769 = vset.pattern.permute.xlu0 0
        %770 = vperm.xlu0 %769, %v712
        %v771 = vpop.permute.xlu0 %770
        %v785 = vunpack.c.l.b16 %v681
        %v786 = vunpack.c.l.b16 %v682
        %v787 = vunpack.c.l.b16 %v683
        %v788 = vunpack.c.l.b16 %v684
        %v789 = vunpack.c.l.b16 %v685
        %v790 = vunpack.c.l.b16 %v686
        %v791 = vunpack.c.l.b16 %v687
        %v792 = vunpack.c.l.b16 %v688
        %v793 = vunpack.c.l.b16 %v689
        %v794 = vunpack.c.l.b16 %v690
        %v795 = vunpack.c.l.b16 %v691
        %v796 = vunpack.c.l.b16 %v692
        %v797 = vpack.c.b16 %v786, %v785
        %v798 = vpack.c.b16 %v788, %v787
        %v799 = vpack.c.b16 %v790, %v789
        %v800 = vpack.c.b16 %v792, %v791
        %v801 = vpack.c.b16 %v794, %v793
        %v802 = vpack.c.b16 %v796, %v795
        %vm803 = vcmask 261120
        %v805 = vsel %vm803, %v797, 0
        %v808 = vsel %vm803, %v798, 0
        %v811 = vsel %vm803, %v799, 0
        %v814 = vsel %vm803, %v800, 0
        %v817 = vsel %vm803, %v801, 0
        %v820 = vsel %vm803, %v802, 0
        %822 = vmatprep.subr.bf16.mxu0 %v694
        %823 = vmatpush1.bf16.msra.mxu0 %v693
        %824 = vmatprep.subr.bf16.mxu0 %v698
        %825 = vmatpush1.bf16.msra.mxu0 %v697
        %826 = vmatprep.subr.bf16.mxu0 0
        %827 = vmatpush1.bf16.msra.mxu0 0
        %828 = vmatprep.subr.bf16.mxu0 0
        %829 = vmatpush1.bf16.msra.mxu0 0
        %830 = vmatprep.subr.bf16.mxu0 0
        %831 = vmatpush1.bf16.msra.mxu0 0
        %832 = vmatprep.subr.bf16.mxu0 0
        %833 = vmatpush1.bf16.msra.mxu0 0
        %834 = vmatprep.subr.bf16.mxu0 0
        %835 = vmatpush1.bf16.msra.mxu0 0
        %836 = vmatprep.subr.bf16.mxu0 0
        %837 = vmatpush1.bf16.msra.mxu0 0
        %838 = vmatprep.subr.bf16.mxu0 0
        %839 = vmatpush1.bf16.msra.mxu0 0
        %840 = vmatprep.subr.bf16.mxu0 0
        %841 = vmatpush1.bf16.msra.mxu0 0
        %842 = vmatprep.subr.bf16.mxu0 0
        %843 = vmatpush1.bf16.msra.mxu0 0
        %844 = vmatprep.subr.bf16.mxu0 0
        %845 = vmatpush1.bf16.msra.mxu0 0
        %846 = vmatprep.subr.bf16.mxu0 0
        %847 = vmatpush1.bf16.msra.mxu0 0
        %848 = vmatprep.subr.bf16.mxu0 0
        %849 = vmatpush1.bf16.msra.mxu0 0
        %850 = vmatprep.subr.bf16.mxu0 0
        %851 = vmatpush1.bf16.msra.mxu0 0
        %852 = vmatprep.subr.bf16.mxu0 0
        %853 = vmatpush1.bf16.msra.mxu0 0
        %854 = vmatprep.mubr.bf16.mxu0 0
        %855 = vmatmul.mubr.bf16.gmra.mrb[0].mxu0 %v805
        %v856 = vpop.f32.mrb[0].mxu0
        %v857 = vadd.f32 %v716, %v856
        %v858 = vpop.f32.mrb[0].mxu0
        %v859 = vadd.f32 %v716, %v858
        %v860 = vpop.f32.mrb[0].mxu0
        %v861 = vadd.f32 %v721, %v860
        %v862 = vpop.f32.mrb[0].mxu0
        %v863 = vadd.f32 %v721, %v862
        %864 = vmatprep.mubr.bf16.mxu0 0
        %865 = vmatmul.mubr.bf16.gmra.mrb[0].mxu0 %v808
        %v866 = vpop.f32.mrb[0].mxu0
        %v867 = vadd.f32 %v726, %v866
        %v868 = vpop.f32.mrb[0].mxu0
        %v869 = vadd.f32 %v726, %v868
        %v870 = vpop.f32.mrb[0].mxu0
        %v871 = vadd.f32 %v731, %v870
        %v872 = vpop.f32.mrb[0].mxu0
        %v873 = vadd.f32 %v731, %v872
        %874 = vmatprep.mubr.bf16.mxu0 0
        %875 = vmatmul.mubr.bf16.gmra.mrb[0].mxu0 %v811
        %v876 = vpop.f32.mrb[0].mxu0
        %v877 = vadd.f32 %v736, %v876
        %v878 = vpop.f32.mrb[0].mxu0
        %v879 = vadd.f32 %v736, %v878
        %v880 = vpop.f32.mrb[0].mxu0
        %v881 = vadd.f32 %v741, %v880
        %v882 = vpop.f32.mrb[0].mxu0
        %v883 = vadd.f32 %v741, %v882
        %884 = vmatprep.mubr.bf16.mxu0 0
        %885 = vmatmul.mubr.bf16.gmra.mrb[0].mxu0 %v814
        %v886 = vpop.f32.mrb[0].mxu0
        %v887 = vadd.f32 %v746, %v886
        %v888 = vpop.f32.mrb[0].mxu0
        %v889 = vadd.f32 %v746, %v888
        %v890 = vpop.f32.mrb[0].mxu0
        %v891 = vadd.f32 %v751, %v890
        %v892 = vpop.f32.mrb[0].mxu0
        %v893 = vadd.f32 %v751, %v892
        %894 = vmatprep.mubr.bf16.mxu0 0
        %895 = vmatmul.mubr.bf16.gmra.mrb[0].mxu0 %v817
        %v896 = vpop.f32.mrb[0].mxu0
        %v897 = vadd.f32 %v756, %v896
        %v898 = vpop.f32.mrb[0].mxu0
        %v899 = vadd.f32 %v756, %v898
        %v900 = vpop.f32.mrb[0].mxu0
        %v901 = vadd.f32 %v761, %v900
        %v902 = vpop.f32.mrb[0].mxu0
        %v903 = vadd.f32 %v761, %v902
        %904 = vmatprep.mubr.bf16.mxu0 0
        %905 = vmatmul.mubr.bf16.gmra.mrb[0].mxu0 %v820
        %v906 = vpop.f32.mrb[0].mxu0
        %v907 = vadd.f32 %v766, %v906
        %v908 = vpop.f32.mrb[0].mxu0
        %v909 = vadd.f32 %v766, %v908
        %v910 = vpop.f32.mrb[0].mxu0
        %v911 = vadd.f32 %v771, %v910
        %v912 = vpop.f32.mrb[0].mxu0
        %v913 = vadd.f32 %v771, %v912
        %914 = vdwg.mxu0
        %915 = vmatprep.subr.bf16.mxu0 %v696
        %916 = vmatpush1.bf16.msra.mxu0 %v695
        %917 = vmatprep.subr.bf16.mxu0 %v700
        %918 = vmatpush1.bf16.msra.mxu0 %v699
        %919 = vmatprep.subr.bf16.mxu0 0
        %920 = vmatpush1.bf16.msra.mxu0 0
        %921 = vmatprep.subr.bf16.mxu0 0
        %922 = vmatpush1.bf16.msra.mxu0 0
        %923 = vmatprep.subr.bf16.mxu0 0
        %924 = vmatpush1.bf16.msra.mxu0 0
        %925 = vmatprep.subr.bf16.mxu0 0
        %926 = vmatpush1.bf16.msra.mxu0 0
        %927 = vmatprep.subr.bf16.mxu0 0
        %928 = vmatpush1.bf16.msra.mxu0 0
        %929 = vmatprep.subr.bf16.mxu0 0
        %930 = vmatpush1.bf16.msra.mxu0 0
        %931 = vmatprep.subr.bf16.mxu0 0
        %932 = vmatpush1.bf16.msra.mxu0 0
        %933 = vmatprep.subr.bf16.mxu0 0
        %934 = vmatpush1.bf16.msra.mxu0 0
        %935 = vmatprep.subr.bf16.mxu0 0
        %936 = vmatpush1.bf16.msra.mxu0 0
        %937 = vmatprep.subr.bf16.mxu0 0
        %938 = vmatpush1.bf16.msra.mxu0 0
        %939 = vmatprep.subr.bf16.mxu0 0
        %940 = vmatpush1.bf16.msra.mxu0 0
        %941 = vmatprep.subr.bf16.mxu0 0
        %942 = vmatpush1.bf16.msra.mxu0 0
        %943 = vmatprep.subr.bf16.mxu0 0
        %944 = vmatpush1.bf16.msra.mxu0 0
        %945 = vmatprep.subr.bf16.mxu0 0
        %946 = vmatpush1.bf16.msra.mxu0 0
        %947 = vmatprep.mubr.bf16.mxu0 0
        %948 = vmatmul.mubr.bf16.gmra.mrb[0].mxu0 %v805
        %v949 = vpop.f32.mrb[0].mxu0
        %v950 = vadd.f32 %v716, %v949
        %v951 = vpop.f32.mrb[0].mxu0
        %v952 = vadd.f32 %v716, %v951
        %v953 = vpop.f32.mrb[0].mxu0
        %v954 = vadd.f32 %v721, %v953
        %v955 = vpop.f32.mrb[0].mxu0
        %v956 = vadd.f32 %v721, %v955
        %957 = vmatprep.mubr.bf16.mxu0 0
        %958 = vmatmul.mubr.bf16.gmra.mrb[0].mxu0 %v808
        %v959 = vpop.f32.mrb[0].mxu0
        %v960 = vadd.f32 %v726, %v959
        %v961 = vpop.f32.mrb[0].mxu0
        %v962 = vadd.f32 %v726, %v961
        %v963 = vpop.f32.mrb[0].mxu0
        %v964 = vadd.f32 %v731, %v963
        %v965 = vpop.f32.mrb[0].mxu0
        %v966 = vadd.f32 %v731, %v965
        %967 = vmatprep.mubr.bf16.mxu0 0
        %968 = vmatmul.mubr.bf16.gmra.mrb[0].mxu0 %v811
        %v969 = vpop.f32.mrb[0].mxu0
        %v970 = vadd.f32 %v736, %v969
        %v971 = vpop.f32.mrb[0].mxu0
        %v972 = vadd.f32 %v736, %v971
        %v973 = vpop.f32.mrb[0].mxu0
        %v974 = vadd.f32 %v741, %v973
        %v975 = vpop.f32.mrb[0].mxu0
        %v976 = vadd.f32 %v741, %v975
        %977 = vmatprep.mubr.bf16.mxu0 0
        %978 = vmatmul.mubr.bf16.gmra.mrb[0].mxu0 %v814
        %v979 = vpop.f32.mrb[0].mxu0
        %v980 = vadd.f32 %v746, %v979
        %v981 = vpop.f32.mrb[0].mxu0
        %v982 = vadd.f32 %v746, %v981
        %v983 = vpop.f32.mrb[0].mxu0
        %v984 = vadd.f32 %v751, %v983
        %v985 = vpop.f32.mrb[0].mxu0
        %v986 = vadd.f32 %v751, %v985
        %987 = vmatprep.mubr.bf16.mxu0 0
        %988 = vmatmul.mubr.bf16.gmra.mrb[0].mxu0 %v817
        %v989 = vpop.f32.mrb[0].mxu0
        %v990 = vadd.f32 %v756, %v989
        %v991 = vpop.f32.mrb[0].mxu0
        %v992 = vadd.f32 %v756, %v991
        %v993 = vpop.f32.mrb[0].mxu0
        %v994 = vadd.f32 %v761, %v993
        %v995 = vpop.f32.mrb[0].mxu0
        %v996 = vadd.f32 %v761, %v995
        %997 = vmatprep.mubr.bf16.mxu0 0
        %998 = vmatmul.mubr.bf16.gmra.mrb[0].mxu0 %v820
        %v999 = vpop.f32.mrb[0].mxu0
        %v1000 = vadd.f32 %v766, %v999
        %v1001 = vpop.f32.mrb[0].mxu0
        %v1002 = vadd.f32 %v766, %v1001
        %v1003 = vpop.f32.mrb[0].mxu0
        %v1004 = vadd.f32 %v771, %v1003
        %v1005 = vpop.f32.mrb[0].mxu0
        %v1006 = vadd.f32 %v771, %v1005
        %1007 = vdwg.mxu0
        %v1008 = vmul.f32 %v857, 0.5
        %v1009 = vmul.f32 %v859, 0.5
        %v1010 = vmul.f32 %v950, 0.5
        %v1011 = vmul.f32 %v952, 0.5
        %v1012 = vmul.f32 %v861, 0.5
        %v1013 = vmul.f32 %v863, 0.5
        %v1014 = vmul.f32 %v954, 0.5
        %v1015 = vmul.f32 %v956, 0.5
        %v1016 = vmul.f32 %v867, 0.5
        %v1017 = vmul.f32 %v869, 0.5
        %v1018 = vmul.f32 %v960, 0.5
        %v1019 = vmul.f32 %v962, 0.5
        %v1020 = vmul.f32 %v871, 0.5
        %v1021 = vmul.f32 %v873, 0.5
        %v1022 = vmul.f32 %v964, 0.5
        %v1023 = vmul.f32 %v966, 0.5
        %v1024 = vmul.f32 %v877, 0.5
        %v1025 = vmul.f32 %v879, 0.5
        %v1026 = vmul.f32 %v970, 0.5
        %v1027 = vmul.f32 %v972, 0.5
        %v1028 = vmul.f32 %v881, 0.5
        %v1029 = vmul.f32 %v883, 0.5
        %v1030 = vmul.f32 %v974, 0.5
        %v1031 = vmul.f32 %v976, 0.5
        %v1032 = vmul.f32 %v887, 0.5
        %v1033 = vmul.f32 %v889, 0.5
        %v1034 = vmul.f32 %v980, 0.5
        %v1035 = vmul.f32 %v982, 0.5
        %v1036 = vmul.f32 %v891, 0.5
        %v1037 = vmul.f32 %v893, 0.5
        %v1038 = vmul.f32 %v984, 0.5
        %v1039 = vmul.f32 %v986, 0.5
        %v1040 = vtanh.pop %v1008
        %v1041 = vtanh.pop %v1009
        %v1042 = vtanh.pop %v1010
        %v1043 = vtanh.pop %v1011
        %v1044 = vtanh.pop %v1012
        %v1045 = vtanh.pop %v1013
        %v1046 = vtanh.pop %v1014
        %v1047 = vtanh.pop %v1015
        %v1048 = vtanh.pop %v1016
        %v1049 = vtanh.pop %v1017
        %v1050 = vtanh.pop %v1018
        %v1051 = vtanh.pop %v1019
        %v1052 = vtanh.pop %v1020
        %v1053 = vtanh.pop %v1021
        %v1054 = vtanh.pop %v1022
        %v1055 = vtanh.pop %v1023
        %v1056 = vtanh.pop %v1024
        %v1057 = vtanh.pop %v1025
        %v1058 = vtanh.pop %v1026
        %v1059 = vtanh.pop %v1027
        %v1060 = vtanh.pop %v1028
        %v1061 = vtanh.pop %v1029
        %v1062 = vtanh.pop %v1030
        %v1063 = vtanh.pop %v1031
        %v1064 = vtanh.pop %v1032
        %v1065 = vtanh.pop %v1033
        %v1066 = vtanh.pop %v1034
        %v1067 = vtanh.pop %v1035
        %v1068 = vtanh.pop %v1036
        %v1069 = vtanh.pop %v1037
        %v1070 = vtanh.pop %v1038
        %v1071 = vtanh.pop %v1039
        %v1072 = vmul.f32 %v1040, 0.5
        %v1073 = vmul.f32 %v1041, 0.5
        %v1074 = vmul.f32 %v1042, 0.5
        %v1075 = vmul.f32 %v1043, 0.5
        %v1076 = vmul.f32 %v1044, 0.5
        %v1077 = vmul.f32 %v1045, 0.5
        %v1078 = vmul.f32 %v1046, 0.5
        %v1079 = vmul.f32 %v1047, 0.5
        %v1080 = vmul.f32 %v1048, 0.5
        %v1081 = vmul.f32 %v1049, 0.5
        %v1082 = vmul.f32 %v1050, 0.5
        %v1083 = vmul.f32 %v1051, 0.5
        %v1084 = vmul.f32 %v1052, 0.5
        %v1085 = vmul.f32 %v1053, 0.5
        %v1086 = vmul.f32 %v1054, 0.5
        %v1087 = vmul.f32 %v1055, 0.5
        %v1088 = vmul.f32 %v1056, 0.5
        %v1089 = vmul.f32 %v1057, 0.5
        %v1090 = vmul.f32 %v1058, 0.5
        %v1091 = vmul.f32 %v1059, 0.5
        %v1092 = vmul.f32 %v1060, 0.5
        %v1093 = vmul.f32 %v1061, 0.5
        %v1094 = vmul.f32 %v1062, 0.5
        %v1095 = vmul.f32 %v1063, 0.5
        %v1096 = vmul.f32 %v1064, 0.5
        %v1097 = vmul.f32 %v1065, 0.5
        %v1098 = vmul.f32 %v1066, 0.5
        %v1099 = vmul.f32 %v1067, 0.5
        %v1100 = vmul.f32 %v1068, 0.5
        %v1101 = vmul.f32 %v1069, 0.5
        %v1102 = vmul.f32 %v1070, 0.5
        %v1103 = vmul.f32 %v1071, 0.5
        %v1104 = vadd.f32 %v1072, 0.5
        %v1105 = vadd.f32 %v1073, 0.5
        %v1106 = vadd.f32 %v1074, 0.5
        %v1107 = vadd.f32 %v1075, 0.5
        %v1108 = vadd.f32 %v1076, 0.5
        %v1109 = vadd.f32 %v1077, 0.5
        %v1110 = vadd.f32 %v1078, 0.5
        %v1111 = vadd.f32 %v1079, 0.5
        %v1112 = vadd.f32 %v1080, 0.5
        %v1113 = vadd.f32 %v1081, 0.5
        %v1114 = vadd.f32 %v1082, 0.5
        %v1115 = vadd.f32 %v1083, 0.5
        %v1116 = vadd.f32 %v1084, 0.5
        %v1117 = vadd.f32 %v1085, 0.5
        %v1118 = vadd.f32 %v1086, 0.5
        %v1119 = vadd.f32 %v1087, 0.5
        %v1120 = vadd.f32 %v1088, 0.5
        %v1121 = vadd.f32 %v1089, 0.5
        %v1122 = vadd.f32 %v1090, 0.5
        %v1123 = vadd.f32 %v1091, 0.5
        %v1124 = vadd.f32 %v1092, 0.5
        %v1125 = vadd.f32 %v1093, 0.5
        %v1126 = vadd.f32 %v1094, 0.5
        %v1127 = vadd.f32 %v1095, 0.5
        %v1128 = vadd.f32 %v1096, 0.5
        %v1129 = vadd.f32 %v1097, 0.5
        %v1130 = vadd.f32 %v1098, 0.5
        %v1131 = vadd.f32 %v1099, 0.5
        %v1132 = vadd.f32 %v1100, 0.5
        %v1133 = vadd.f32 %v1101, 0.5
        %v1134 = vadd.f32 %v1102, 0.5
        %v1135 = vadd.f32 %v1103, 0.5
        %v1136 = vtanh.pop %v897
        %v1137 = vtanh.pop %v899
        %v1138 = vtanh.pop %v990
        %v1139 = vtanh.pop %v992
        %v1140 = vtanh.pop %v901
        %v1141 = vtanh.pop %v903
        %v1142 = vtanh.pop %v994
        %v1143 = vtanh.pop %v996
        %v1144 = vtanh.pop %v907
        %v1145 = vtanh.pop %v909
        %v1146 = vtanh.pop %v1000
        %v1147 = vtanh.pop %v1002
        %v1148 = vtanh.pop %v911
        %v1149 = vtanh.pop %v913
        %v1150 = vtanh.pop %v1004
        %v1151 = vtanh.pop %v1006
        %v1152 = vmul.f32 %v1104, %v1136
        %v1153 = vmul.f32 %v1105, %v1137
        %v1154 = vmul.f32 %v1106, %v1138
        %v1155 = vmul.f32 %v1107, %v1139
        %v1156 = vmul.f32 %v1108, %v1140
        %v1157 = vmul.f32 %v1109, %v1141
        %v1158 = vmul.f32 %v1110, %v1142
        %v1159 = vmul.f32 %v1111, %v1143
        %v1160 = vmul.f32 %v1112, %v1144
        %v1161 = vmul.f32 %v1113, %v1145
        %v1162 = vmul.f32 %v1114, %v1146
        %v1163 = vmul.f32 %v1115, %v1147
        %v1164 = vmul.f32 %v1116, %v1148
        %v1165 = vmul.f32 %v1117, %v1149
        %v1166 = vmul.f32 %v1118, %v1150
        %v1167 = vmul.f32 %v1119, %v1151
        %v1168 = vtanh.pop %v1152
        %v1169 = vtanh.pop %v1153
        %v1170 = vtanh.pop %v1154
        %v1171 = vtanh.pop %v1155
        %v1172 = vtanh.pop %v1156
        %v1173 = vtanh.pop %v1157
        %v1174 = vtanh.pop %v1158
        %v1175 = vtanh.pop %v1159
        %v1176 = vtanh.pop %v1160
        %v1177 = vtanh.pop %v1161
        %v1178 = vtanh.pop %v1162
        %v1179 = vtanh.pop %v1163
        %v1180 = vtanh.pop %v1164
        %v1181 = vtanh.pop %v1165
        %v1182 = vtanh.pop %v1166
        %v1183 = vtanh.pop %v1167
        %v1184 = vmul.f32 %v1120, %v1168
        %v1185 = vmul.f32 %v1121, %v1169
        %v1186 = vmul.f32 %v1122, %v1170
        %v1187 = vmul.f32 %v1123, %v1171
        %v1188 = vmul.f32 %v1124, %v1172
        %v1189 = vmul.f32 %v1125, %v1173
        %v1190 = vmul.f32 %v1126, %v1174
        %v1191 = vmul.f32 %v1127, %v1175
        %v1192 = vmul.f32 %v1128, %v1176
        %v1193 = vmul.f32 %v1129, %v1177
        %v1194 = vmul.f32 %v1130, %v1178
        %v1195 = vmul.f32 %v1131, %v1179
        %v1196 = vmul.f32 %v1132, %v1180
        %v1197 = vmul.f32 %v1133, %v1181
        %v1198 = vmul.f32 %v1134, %v1182
        %v1199 = vmul.f32 %v1135, %v1183
        %v1200 = vld [vmem:[%s4] sm:$0x1]
        %v1201 = vpack.c.bf16 %v1188, %v1184
        %v1202 = vpack.c.bf16 %v1189, %v1185
        %v1203 = vpack.c.bf16 %v1190, %v1186
        %v1204 = vpack.c.bf16 %v1191, %v1187
        %v1205 = vpack.c.bf16 %v1196, %v1192
        %v1206 = vpack.c.bf16 %v1197, %v1193
        %v1207 = vpack.c.bf16 %v1198, %v1194
        %v1208 = vpack.c.bf16 %v1199, %v1195
        %v1209 = vld [vmem:[%s5] sm:$0x3]
        %1211 = vset.pattern.permute.xlu0 0
        %1212 = vperm.xlu0 %1211, %v1209
        %v1213 = vpop.permute.xlu0 %1212
        %v1216 = vsel %vm803, %v1200, 0
        %1218 = vmatprep.subr.bf16.mxu0 %v1202
        %1219 = vmatpush1.bf16.msra.mxu0 %v1201
        %1220 = vmatprep.subr.bf16.mxu0 %v1206
        %1221 = vmatpush1.bf16.msra.mxu0 %v1205
        %1222 = vmatprep.subr.bf16.mxu0 0
        %1223 = vmatpush1.bf16.msra.mxu0 0
        %1224 = vmatprep.subr.bf16.mxu0 0
        %1225 = vmatpush1.bf16.msra.mxu0 0
        %1226 = vmatprep.subr.bf16.mxu0 0
        %1227 = vmatpush1.bf16.msra.mxu0 0
        %1228 = vmatprep.subr.bf16.mxu0 0
        %1229 = vmatpush1.bf16.msra.mxu0 0
        %1230 = vmatprep.subr.bf16.mxu0 0
        %1231 = vmatpush1.bf16.msra.mxu0 0
        %1232 = vmatprep.subr.bf16.mxu0 0
        %1233 = vmatpush1.bf16.msra.mxu0 0
        %1234 = vmatprep.subr.bf16.mxu0 0
        %1235 = vmatpush1.bf16.msra.mxu0 0
        %1236 = vmatprep.subr.bf16.mxu0 0
        %1237 = vmatpush1.bf16.msra.mxu0 0
        %1238 = vmatprep.subr.bf16.mxu0 0
        %1239 = vmatpush1.bf16.msra.mxu0 0
        %1240 = vmatprep.subr.bf16.mxu0 0
        %1241 = vmatpush1.bf16.msra.mxu0 0
        %1242 = vmatprep.subr.bf16.mxu0 0
        %1243 = vmatpush1.bf16.msra.mxu0 0
        %1244 = vmatprep.subr.bf16.mxu0 0
        %1245 = vmatpush1.bf16.msra.mxu0 0
        %1246 = vmatprep.subr.bf16.mxu0 0
        %1247 = vmatpush1.bf16.msra.mxu0 0
        %1248 = vmatprep.subr.bf16.mxu0 0
        %1249 = vmatpush1.bf16.msra.mxu0 0
        %1250 = vmatprep.mubr.bf16.mxu0 0
        %1251 = vmatmul.mubr.bf16.gmra.mrb[0].mxu0 %v1216
        %v1252 = vpop.f32.mrb[0].mxu0
        %v1253 = vadd.f32 %v1213, %v1252
        %v1254 = vpop.f32.mrb[0].mxu0
        %v1255 = vadd.f32 %v1213, %v1254
        %v1256 = vpop.f32.mrb[0].mxu0
        %v1257 = vpop.f32.mrb[0].mxu0
        %1258 = vdwg.mxu0
        %1259 = vmatprep.subr.bf16.mxu0 %v1204
        %1260 = vmatpush1.bf16.msra.mxu0 %v1203
        %1261 = vmatprep.subr.bf16.mxu0 %v1208
        %1262 = vmatpush1.bf16.msra.mxu0 %v1207
        %1263 = vmatprep.subr.bf16.mxu0 0
        %1264 = vmatpush1.bf16.msra.mxu0 0
        %1265 = vmatprep.subr.bf16.mxu0 0
        %1266 = vmatpush1.bf16.msra.mxu0 0
        %1267 = vmatprep.subr.bf16.mxu0 0
        %1268 = vmatpush1.bf16.msra.mxu0 0
        %1269 = vmatprep.subr.bf16.mxu0 0
        %1270 = vmatpush1.bf16.msra.mxu0 0
        %1271 = vmatprep.subr.bf16.mxu0 0
        %1272 = vmatpush1.bf16.msra.mxu0 0
        %1273 = vmatprep.subr.bf16.mxu0 0
        %1274 = vmatpush1.bf16.msra.mxu0 0
        %1275 = vmatprep.subr.bf16.mxu0 0
        %1276 = vmatpush1.bf16.msra.mxu0 0
        %1277 = vmatprep.subr.bf16.mxu0 0
        %1278 = vmatpush1.bf16.msra.mxu0 0
        %1279 = vmatprep.subr.bf16.mxu0 0
        %1280 = vmatpush1.bf16.msra.mxu0 0
        %1281 = vmatprep.subr.bf16.mxu0 0
        %1282 = vmatpush1.bf16.msra.mxu0 0
        %1283 = vmatprep.subr.bf16.mxu0 0
        %1284 = vmatpush1.bf16.msra.mxu0 0
        %1285 = vmatprep.subr.bf16.mxu0 0
        %1286 = vmatpush1.bf16.msra.mxu0 0
        %1287 = vmatprep.subr.bf16.mxu0 0
        %1288 = vmatpush1.bf16.msra.mxu0 0
        %1289 = vmatprep.subr.bf16.mxu0 0
        %1290 = vmatpush1.bf16.msra.mxu0 0
        %1291 = vmatprep.mubr.bf16.mxu0 0
        %1292 = vmatmul.mubr.bf16.gmra.mrb[0].mxu0 %v1216
        %v1293 = vpop.f32.mrb[0].mxu0
        %v1294 = vadd.f32 %v1213, %v1293
        %v1295 = vpop.f32.mrb[0].mxu0
        %v1296 = vadd.f32 %v1213, %v1295
        %v1297 = vpop.f32.mrb[0].mxu0
        %v1298 = vpop.f32.mrb[0].mxu0
        %1299 = vdwg.mxu0
        %v1304 = vcombine.low %v1253, %v1255
        %v1305 = vcombine.low %v1294, %v1296
        %v1307 = vunpack.c.l.s4 1983009808
        %v1308 = vunpack.c.0.s8 %v1307
        %v1309 = vlaneseq
        %v1310 = vshrl.u32 %v1309, 7
        %v1311 = vsub.s32 %v1308, %v1310
        %v1312 = vrot.slane %v1304, %v1311
        %v1314 = vunpack.c.l.s4 1983009808
        %v1315 = vunpack.c.0.s8 %v1314
        %v1316 = vlaneseq
        %v1317 = vshrl.u32 %v1316, 7
        %v1318 = vsub.s32 %v1315, %v1317
        %v1319 = vrot.slane %v1305, %v1318
        %v1320 = vcombine.low %v1312, %v1319
        %1322 = vst [vmem:[%s243] sm:$0xff] %v1320
        %s1323 = sand.u32 %s159, 1
        %s1324 = scalar_lea.sflag [#allocation3], %s1323
        %s1325 = sand.u32 %s159, 1
        %s1326 = smul.addr %s1325, 8
        %s1327 = scalar_lea.vmem [#allocation2], %s1326
        // Predicated region
        $region45: #{tpu_custom_call.1} parent=43 // pred_check
          %p1328 = pneg %p169
        $region46: #{tpu_custom_call.1} parent=43 // pred_check_branch
          %1330 = sbr.rel (%p1328) target = $region48
        $region47: #{tpu_custom_call.1} parent=43 // pred_region
          %s1331 = smul.u32 4, %s20
          %s1333 = ssub.s32 128, 128
          %1334 = vsyncadd %s1324, %s1333
          %s1335 = smul.addr %s1331, 32
          %s1336 = scalar_lea.hbm %s6, %s1335
          %s1338 = sshll.u32 %s1327, 4
          %s1339 = int_to_ptr.vmem [resolvable:$true] %s1338
          %1341 = dma.vmem_to_hbm [thread:$0]  %s1339, 128, %s1336, %s1324
        $region48: #{tpu_custom_call.1} parent=43 // pred_fallthru
          _
      $region44: #{tpu_custom_call.1} parent=5 // pred_fallthru
        _
      %p1342 = scmp.le.s32.totalorder 2, %s15
      // Predicated region
      $region49: #{tpu_custom_call.1} parent=5 // pred_check
        %p1343 = pneg %p1342
      $region50: #{tpu_custom_call.1} parent=5 // pred_check_branch
        %1345 = sbr.rel (%p1343) target = $region52
      $region51: #{tpu_custom_call.1} parent=5 // pred_region
        %s1346 = ssub.s32 %s15, 2
        // Predicated region
        $region53: #{tpu_custom_call.1} parent=51 // pred_check
          %p1347 = pneg %p175
        $region54: #{tpu_custom_call.1} parent=51 // pred_check_branch
          %1349 = sbr.rel (%p1347) target = $region56
        $region55: #{tpu_custom_call.1} parent=51 // pred_region
          %s1350 = sand.u32 %s160, 1
          %s1351 = scalar_lea.sflag [#allocation3], %s1350
          %s1352 = sand.u32 %s160, 1
          %s1353 = smul.addr %s1352, 8
          %s1354 = scalar_lea.vmem [#allocation2], %s1353
          %1355 = dma.done %s1351, 128
        $region56: #{tpu_custom_call.1} parent=51 // pred_fallthru
          _
      $region52: #{tpu_custom_call.1} parent=5 // pred_fallthru
        _
    $region6: #{tpu_custom_call.1} parent=1 // loop_footer
      %s19 = sadd.s32 1, %s15
    $region7: #{tpu_custom_call.1} parent=1 // loop_footer_branch
      %14 = sbr.rel target = $region3
    $region8: #{tpu_custom_call.1} parent=1 // loop_exit
      _
    %1356 = vsyncpa [#allocation3], 1
    %s1357 = scalar_lea.sflag [#allocation3], 1
    %1358 = vsyncpa %s1357, 1

</llo_original>
